<compile_context>
chip_gen: v7x
topology: tpu7x:2x2x1
jax: 0.10.0
libtpu: 0.0.40
codegen_flags: <defaults>
</compile_context>

<pallas_src>
import functools

import jax
import jax.numpy as jnp
import numpy as np
from jax.experimental import pallas as pl
from jax.experimental.pallas import tpu as pltpu


def _conv_bn_relu6_kernel(w_ref, b_ref, x_ref, o_ref, *, dims):
    """w_ref: VMEM (C_out, C_in*KH*KW) f32 -- BN-folded conv weight
       b_ref: VMEM (C_out, 1) f32          -- BN-folded conv bias
       x_ref: VMEM (N, C_in, H, W) f32     -- whole input, single tile
       o_ref: VMEM (N, C_out, OH*OW) f32   -- lane-dense output slab
    """
    N, C_in, H, W, C_out, KH, KW, OH, OW = dims

    x = x_ref[...]          # single load of the whole input
    w = w_ref[...]          # (C_out, C_in*KH*KW) -- one small tile
    b = b_ref[...]          # (C_out, 1)

    # One (C_out, OW) accumulator per (n, output-row); every MAC is
    # vectorized over C_out on the sublane axis.
    accs = [[None] * OH for _ in range(N)]

    col = 0
    for ci in range(C_in):
        for kh in range(KH):
            for kw in range(KW):
                w_col = w[:, col:col + 1]                        # (C_out, 1)
                for n in range(N):
                    for oh in range(OH):
                        patch = x[n:n + 1, ci, oh + kh, kw:kw + OW]  # (1, OW)
                        term = w_col * patch                     # (C_out, OW)
                        a = accs[n][oh]
                        accs[n][oh] = term if a is None else a + term
                col += 1

    # Fused bias + ReLU6 + (+5) epilogue, lane-sliced stores into the
    # lane-dense output slab.
    for n in range(N):
        for oh in range(OH):
            res = jnp.clip(accs[n][oh] + b, 0.0, 6.0) + 5.0      # (C_out, OW)
            o_ref[n, :, oh * OW:(oh + 1) * OW] = res


def conv_bn_relu6_plus5(x, weight, bias, gamma, beta, running_mean, running_var,
                        eps=1e-5):
    """x: (N, C_in, H, W) float32. Returns (N, C_out, OH, OW) float32."""
    N, C_in, H, W = x.shape
    C_out, _, KH, KW = weight.shape
    OH, OW = H - KH + 1, W - KW + 1

    # --- fold BatchNorm into conv weight/bias (tiny (C_out,) glue) ---
    # TODO(synk): PyTorch BatchNorm2d defaults to train mode (batch stats);
    # conv+BN folding is only valid in eval(), so eval-mode (running-stat) BN
    # is what is implemented here.
    inv_std = 1.0 / jnp.sqrt(running_var + eps)
    scale = gamma * inv_std                                      # (C_out,)
    w_fused = (weight * scale[:, None, None, None]).astype(jnp.float32)
    b_fused = ((bias - running_mean) * scale + beta).astype(jnp.float32)

    w_tile = w_fused.reshape(C_out, C_in * KH * KW)              # (C_out, 36)
    b_tile = b_fused.reshape(C_out, 1)                           # (C_out, 1)

    dims = (N, C_in, H, W, C_out, KH, KW, OH, OW)
    kernel = functools.partial(_conv_bn_relu6_kernel, dims=dims)

    # NOTE(perf): at real batch sizes one would add a grid axis over N marked
    # "parallel" (feeds both v7x TensorCores) with multiple-of-128 lane-dense
    # output tiles; at (1,4,4,4) a single invocation is launch/DMA-bound and
    # cheapest (no grid, no multi-buffering, whole-array VMEM blocks <1 KiB).
    out_flat = pl.pallas_call(
        kernel,
        out_shape=jax.ShapeDtypeStruct((N, C_out, OH * OW), jnp.float32),
        in_specs=[
            pl.BlockSpec(memory_space=pltpu.MemorySpace.VMEM),   # folded weight
            pl.BlockSpec(memory_space=pltpu.MemorySpace.VMEM),   # folded bias
            pl.BlockSpec(memory_space=pltpu.MemorySpace.VMEM),   # whole input
        ],
        out_specs=pl.BlockSpec(memory_space=pltpu.MemorySpace.VMEM),
    )(w_tile, b_tile, x.astype(jnp.float32))

    # contiguous (metadata-only) reshape back to NCHW
    return out_flat.reshape(N, C_out, OH, OW)


if __name__ == "__main__":
    key = jax.random.PRNGKey(0)
    k_x, k_w, k_b = jax.random.split(key, 3)

    # shapes matching the PyTorch module: x2 = torch.randn(1, 4, 4, 4)
    N, C_in, H, W = 1, 4, 4, 4
    C_out, KH, KW = 4, 3, 3

    x = jax.random.normal(k_x, (N, C_in, H, W), dtype=jnp.float32)
    weight = jax.random.normal(k_w, (C_out, C_in, KH, KW), dtype=jnp.float32) * 0.1
    bias = jax.random.normal(k_b, (C_out,), dtype=jnp.float32) * 0.1

    # BatchNorm2d default parameters / buffers (eval mode)
    gamma = jnp.ones((C_out,), jnp.float32)
    beta = jnp.zeros((C_out,), jnp.float32)
    running_mean = jnp.zeros((C_out,), jnp.float32)
    running_var = jnp.ones((C_out,), jnp.float32)

    out = conv_bn_relu6_plus5(x, weight, bias, gamma, beta,
                              running_mean, running_var)
    out = jax.block_until_ready(out)

    # pure-JAX reference for sanity
    conv_ref = jax.lax.conv_general_dilated(
        x, weight, window_strides=(1, 1), padding="VALID",
        dimension_numbers=("NCHW", "OIHW", "NCHW"))
    conv_ref = conv_ref + bias[None, :, None, None]
    inv_std = 1.0 / jnp.sqrt(running_var + 1e-5)
    bn_ref = (conv_ref - running_mean[None, :, None, None]) * \
        (gamma * inv_std)[None, :, None, None] + beta[None, :, None, None]
    ref = jnp.clip(bn_ref, 0.0, 6.0) + 5.0

    assert out.shape == (N, C_out, H - KH + 1, W - KW + 1)
    np.testing.assert_allclose(np.asarray(out), np.asarray(ref),
                               rtol=1e-5, atol=1e-5)
    print("KERNEL_OK")
</pallas_src>

<mosaic_0001>
module attributes {stable_mosaic.version = 11 : i64} {
  func.func @_conv_bn_relu6_kernel(%arg0: memref<4x36xf32, #tpu.memory_space<vmem>>, %arg1: memref<4x1xf32, #tpu.memory_space<vmem>>, %arg2: memref<1x4x4x4xf32, #tpu.memory_space<vmem>>, %arg3: memref<1x4x4xf32, #tpu.memory_space<vmem>>) attributes {dimension_semantics = [], scalar_prefetch = 0 : i64, scratch_operands = 0 : i64, tpu.core_type = #tpu.core_type<tc>} {
    %c0 = arith.constant 0 : index
    %c0_0 = arith.constant 0 : index
    %c0_1 = arith.constant 0 : index
    %c0_2 = arith.constant 0 : index
    %0 = vector.load %arg2[%c0, %c0_0, %c0_1, %c0_2] : memref<1x4x4x4xf32, #tpu.memory_space<vmem>>, vector<1x4x4x4xf32>
    %c0_3 = arith.constant 0 : index
    %c0_4 = arith.constant 0 : index
    %1 = vector.load %arg0[%c0_3, %c0_4] : memref<4x36xf32, #tpu.memory_space<vmem>>, vector<4x36xf32>
    %c0_5 = arith.constant 0 : index
    %c0_6 = arith.constant 0 : index
    %2 = vector.load %arg1[%c0_5, %c0_6] : memref<4x1xf32, #tpu.memory_space<vmem>>, vector<4x1xf32>
    %3 = vector.extract_strided_slice %1 {offsets = [0, 0], sizes = [4, 1], strides = [1, 1]} : vector<4x36xf32> to vector<4x1xf32>
    %4 = vector.extract_strided_slice %0 {offsets = [0, 0, 0, 0], sizes = [1, 1, 1, 2], strides = [1, 1, 1, 1]} : vector<1x4x4x4xf32> to vector<1x1x1x2xf32>
    %5 = vector.shape_cast %4 : vector<1x1x1x2xf32> to vector<1x2xf32>
    %6 = vector.broadcast %3 : vector<4x1xf32> to vector<4x2xf32>
    %7 = vector.broadcast %5 : vector<1x2xf32> to vector<4x2xf32>
    %8 = arith.mulf %6, %7 : vector<4x2xf32>
    %9 = vector.extract_strided_slice %0 {offsets = [0, 0, 1, 0], sizes = [1, 1, 1, 2], strides = [1, 1, 1, 1]} : vector<1x4x4x4xf32> to vector<1x1x1x2xf32>
    %10 = vector.shape_cast %9 : vector<1x1x1x2xf32> to vector<1x2xf32>
    %11 = vector.broadcast %3 : vector<4x1xf32> to vector<4x2xf32>
    %12 = vector.broadcast %10 : vector<1x2xf32> to vector<4x2xf32>
    %13 = arith.mulf %11, %12 : vector<4x2xf32>
    %14 = vector.extract_strided_slice %1 {offsets = [0, 1], sizes = [4, 1], strides = [1, 1]} : vector<4x36xf32> to vector<4x1xf32>
    %15 = vector.extract_strided_slice %0 {offsets = [0, 0, 0, 1], sizes = [1, 1, 1, 2], strides = [1, 1, 1, 1]} : vector<1x4x4x4xf32> to vector<1x1x1x2xf32>
    %16 = vector.shape_cast %15 : vector<1x1x1x2xf32> to vector<1x2xf32>
    %17 = vector.broadcast %14 : vector<4x1xf32> to vector<4x2xf32>
    %18 = vector.broadcast %16 : vector<1x2xf32> to vector<4x2xf32>
    %19 = arith.mulf %17, %18 : vector<4x2xf32>
    %20 = arith.addf %8, %19 : vector<4x2xf32>
    %21 = vector.extract_strided_slice %0 {offsets = [0, 0, 1, 1], sizes = [1, 1, 1, 2], strides = [1, 1, 1, 1]} : vector<1x4x4x4xf32> to vector<1x1x1x2xf32>
    %22 = vector.shape_cast %21 : vector<1x1x1x2xf32> to vector<1x2xf32>
    %23 = vector.broadcast %14 : vector<4x1xf32> to vector<4x2xf32>
    %24 = vector.broadcast %22 : vector<1x2xf32> to vector<4x2xf32>
    %25 = arith.mulf %23, %24 : vector<4x2xf32>
    %26 = arith.addf %13, %25 : vector<4x2xf32>
    %27 = vector.extract_strided_slice %1 {offsets = [0, 2], sizes = [4, 1], strides = [1, 1]} : vector<4x36xf32> to vector<4x1xf32>
    %28 = vector.extract_strided_slice %0 {offsets = [0, 0, 0, 2], sizes = [1, 1, 1, 2], strides = [1, 1, 1, 1]} : vector<1x4x4x4xf32> to vector<1x1x1x2xf32>
    %29 = vector.shape_cast %28 : vector<1x1x1x2xf32> to vector<1x2xf32>
    %30 = vector.broadcast %27 : vector<4x1xf32> to vector<4x2xf32>
    %31 = vector.broadcast %29 : vector<1x2xf32> to vector<4x2xf32>
    %32 = arith.mulf %30, %31 : vector<4x2xf32>
    %33 = arith.addf %20, %32 : vector<4x2xf32>
    %34 = vector.extract_strided_slice %0 {offsets = [0, 0, 1, 2], sizes = [1, 1, 1, 2], strides = [1, 1, 1, 1]} : vector<1x4x4x4xf32> to vector<1x1x1x2xf32>
    %35 = vector.shape_cast %34 : vector<1x1x1x2xf32> to vector<1x2xf32>
    %36 = vector.broadcast %27 : vector<4x1xf32> to vector<4x2xf32>
    %37 = vector.broadcast %35 : vector<1x2xf32> to vector<4x2xf32>
    %38 = arith.mulf %36, %37 : vector<4x2xf32>
    %39 = arith.addf %26, %38 : vector<4x2xf32>
    %40 = vector.extract_strided_slice %1 {offsets = [0, 3], sizes = [4, 1], strides = [1, 1]} : vector<4x36xf32> to vector<4x1xf32>
    %41 = vector.extract_strided_slice %0 {offsets = [0, 0, 1, 0], sizes = [1, 1, 1, 2], strides = [1, 1, 1, 1]} : vector<1x4x4x4xf32> to vector<1x1x1x2xf32>
    %42 = vector.shape_cast %41 : vector<1x1x1x2xf32> to vector<1x2xf32>
    %43 = vector.broadcast %40 : vector<4x1xf32> to vector<4x2xf32>
    %44 = vector.broadcast %42 : vector<1x2xf32> to vector<4x2xf32>
    %45 = arith.mulf %43, %44 : vector<4x2xf32>
    %46 = arith.addf %33, %45 : vector<4x2xf32>
    %47 = vector.extract_strided_slice %0 {offsets = [0, 0, 2, 0], sizes = [1, 1, 1, 2], strides = [1, 1, 1, 1]} : vector<1x4x4x4xf32> to vector<1x1x1x2xf32>
    %48 = vector.shape_cast %47 : vector<1x1x1x2xf32> to vector<1x2xf32>
    %49 = vector.broadcast %40 : vector<4x1xf32> to vector<4x2xf32>
    %50 = vector.broadcast %48 : vector<1x2xf32> to vector<4x2xf32>
    %51 = arith.mulf %49, %50 : vector<4x2xf32>
    %52 = arith.addf %39, %51 : vector<4x2xf32>
    %53 = vector.extract_strided_slice %1 {offsets = [0, 4], sizes = [4, 1], strides = [1, 1]} : vector<4x36xf32> to vector<4x1xf32>
    %54 = vector.extract_strided_slice %0 {offsets = [0, 0, 1, 1], sizes = [1, 1, 1, 2], strides = [1, 1, 1, 1]} : vector<1x4x4x4xf32> to vector<1x1x1x2xf32>
    %55 = vector.shape_cast %54 : vector<1x1x1x2xf32> to vector<1x2xf32>
    %56 = vector.broadcast %53 : vector<4x1xf32> to vector<4x2xf32>
    %57 = vector.broadcast %55 : vector<1x2xf32> to vector<4x2xf32>
    %58 = arith.mulf %56, %57 : vector<4x2xf32>
    %59 = arith.addf %46, %58 : vector<4x2xf32>
    %60 = vector.extract_strided_slice %0 {offsets = [0, 0, 2, 1], sizes = [1, 1, 1, 2], strides = [1, 1, 1, 1]} : vector<1x4x4x4xf32> to vector<1x1x1x2xf32>
    %61 = vector.shape_cast %60 : vector<1x1x1x2xf32> to vector<1x2xf32>
    %62 = vector.broadcast %53 : vector<4x1xf32> to vector<4x2xf32>
    %63 = vector.broadcast %61 : vector<1x2xf32> to vector<4x2xf32>
    %64 = arith.mulf %62, %63 : vector<4x2xf32>
    %65 = arith.addf %52, %64 : vector<4x2xf32>
    %66 = vector.extract_strided_slice %1 {offsets = [0, 5], sizes = [4, 1], strides = [1, 1]} : vector<4x36xf32> to vector<4x1xf32>
    %67 = vector.extract_strided_slice %0 {offsets = [0, 0, 1, 2], sizes = [1, 1, 1, 2], strides = [1, 1, 1, 1]} : vector<1x4x4x4xf32> to vector<1x1x1x2xf32>
    %68 = vector.shape_cast %67 : vector<1x1x1x2xf32> to vector<1x2xf32>
    %69 = vector.broadcast %66 : vector<4x1xf32> to vector<4x2xf32>
    %70 = vector.broadcast %68 : vector<1x2xf32> to vector<4x2xf32>
    %71 = arith.mulf %69, %70 : vector<4x2xf32>
    %72 = arith.addf %59, %71 : vector<4x2xf32>
    %73 = vector.extract_strided_slice %0 {offsets = [0, 0, 2, 2], sizes = [1, 1, 1, 2], strides = [1, 1, 1, 1]} : vector<1x4x4x4xf32> to vector<1x1x1x2xf32>
    %74 = vector.shape_cast %73 : vector<1x1x1x2xf32> to vector<1x2xf32>
    %75 = vector.broadcast %66 : vector<4x1xf32> to vector<4x2xf32>
    %76 = vector.broadcast %74 : vector<1x2xf32> to vector<4x2xf32>
    %77 = arith.mulf %75, %76 : vector<4x2xf32>
    %78 = arith.addf %65, %77 : vector<4x2xf32>
    %79 = vector.extract_strided_slice %1 {offsets = [0, 6], sizes = [4, 1], strides = [1, 1]} : vector<4x36xf32> to vector<4x1xf32>
    %80 = vector.extract_strided_slice %0 {offsets = [0, 0, 2, 0], sizes = [1, 1, 1, 2], strides = [1, 1, 1, 1]} : vector<1x4x4x4xf32> to vector<1x1x1x2xf32>
    %81 = vector.shape_cast %80 : vector<1x1x1x2xf32> to vector<1x2xf32>
    %82 = vector.broadcast %79 : vector<4x1xf32> to vector<4x2xf32>
    %83 = vector.broadcast %81 : vector<1x2xf32> to vector<4x2xf32>
    %84 = arith.mulf %82, %83 : vector<4x2xf32>
    %85 = arith.addf %72, %84 : vector<4x2xf32>
    %86 = vector.extract_strided_slice %0 {offsets = [0, 0, 3, 0], sizes = [1, 1, 1, 2], strides = [1, 1, 1, 1]} : vector<1x4x4x4xf32> to vector<1x1x1x2xf32>
    %87 = vector.shape_cast %86 : vector<1x1x1x2xf32> to vector<1x2xf32>
    %88 = vector.broadcast %79 : vector<4x1xf32> to vector<4x2xf32>
    %89 = vector.broadcast %87 : vector<1x2xf32> to vector<4x2xf32>
    %90 = arith.mulf %88, %89 : vector<4x2xf32>
    %91 = arith.addf %78, %90 : vector<4x2xf32>
    %92 = vector.extract_strided_slice %1 {offsets = [0, 7], sizes = [4, 1], strides = [1, 1]} : vector<4x36xf32> to vector<4x1xf32>
    %93 = vector.extract_strided_slice %0 {offsets = [0, 0, 2, 1], sizes = [1, 1, 1, 2], strides = [1, 1, 1, 1]} : vector<1x4x4x4xf32> to vector<1x1x1x2xf32>
    %94 = vector.shape_cast %93 : vector<1x1x1x2xf32> to vector<1x2xf32>
    %95 = vector.broadcast %92 : vector<4x1xf32> to vector<4x2xf32>
    %96 = vector.broadcast %94 : vector<1x2xf32> to vector<4x2xf32>
    %97 = arith.mulf %95, %96 : vector<4x2xf32>
    %98 = arith.addf %85, %97 : vector<4x2xf32>
    %99 = vector.extract_strided_slice %0 {offsets = [0, 0, 3, 1], sizes = [1, 1, 1, 2], strides = [1, 1, 1, 1]} : vector<1x4x4x4xf32> to vector<1x1x1x2xf32>
    %100 = vector.shape_cast %99 : vector<1x1x1x2xf32> to vector<1x2xf32>
    %101 = vector.broadcast %92 : vector<4x1xf32> to vector<4x2xf32>
    %102 = vector.broadcast %100 : vector<1x2xf32> to vector<4x2xf32>
    %103 = arith.mulf %101, %102 : vector<4x2xf32>
    %104 = arith.addf %91, %103 : vector<4x2xf32>
    %105 = vector.extract_strided_slice %1 {offsets = [0, 8], sizes = [4, 1], strides = [1, 1]} : vector<4x36xf32> to vector<4x1xf32>
    %106 = vector.extract_strided_slice %0 {offsets = [0, 0, 2, 2], sizes = [1, 1, 1, 2], strides = [1, 1, 1, 1]} : vector<1x4x4x4xf32> to vector<1x1x1x2xf32>
    %107 = vector.shape_cast %106 : vector<1x1x1x2xf32> to vector<1x2xf32>
    %108 = vector.broadcast %105 : vector<4x1xf32> to vector<4x2xf32>
    %109 = vector.broadcast %107 : vector<1x2xf32> to vector<4x2xf32>
    %110 = arith.mulf %108, %109 : vector<4x2xf32>
    %111 = arith.addf %98, %110 : vector<4x2xf32>
    %112 = vector.extract_strided_slice %0 {offsets = [0, 0, 3, 2], sizes = [1, 1, 1, 2], strides = [1, 1, 1, 1]} : vector<1x4x4x4xf32> to vector<1x1x1x2xf32>
    %113 = vector.shape_cast %112 : vector<1x1x1x2xf32> to vector<1x2xf32>
    %114 = vector.broadcast %105 : vector<4x1xf32> to vector<4x2xf32>
    %115 = vector.broadcast %113 : vector<1x2xf32> to vector<4x2xf32>
    %116 = arith.mulf %114, %115 : vector<4x2xf32>
    %117 = arith.addf %104, %116 : vector<4x2xf32>
    %118 = vector.extract_strided_slice %1 {offsets = [0, 9], sizes = [4, 1], strides = [1, 1]} : vector<4x36xf32> to vector<4x1xf32>
    %119 = vector.extract_strided_slice %0 {offsets = [0, 1, 0, 0], sizes = [1, 1, 1, 2], strides = [1, 1, 1, 1]} : vector<1x4x4x4xf32> to vector<1x1x1x2xf32>
    %120 = vector.shape_cast %119 : vector<1x1x1x2xf32> to vector<1x2xf32>
    %121 = vector.broadcast %118 : vector<4x1xf32> to vector<4x2xf32>
    %122 = vector.broadcast %120 : vector<1x2xf32> to vector<4x2xf32>
    %123 = arith.mulf %121, %122 : vector<4x2xf32>
    %124 = arith.addf %111, %123 : vector<4x2xf32>
    %125 = vector.extract_strided_slice %0 {offsets = [0, 1, 1, 0], sizes = [1, 1, 1, 2], strides = [1, 1, 1, 1]} : vector<1x4x4x4xf32> to vector<1x1x1x2xf32>
    %126 = vector.shape_cast %125 : vector<1x1x1x2xf32> to vector<1x2xf32>
    %127 = vector.broadcast %118 : vector<4x1xf32> to vector<4x2xf32>
    %128 = vector.broadcast %126 : vector<1x2xf32> to vector<4x2xf32>
    %129 = arith.mulf %127, %128 : vector<4x2xf32>
    %130 = arith.addf %117, %129 : vector<4x2xf32>
    %131 = vector.extract_strided_slice %1 {offsets = [0, 10], sizes = [4, 1], strides = [1, 1]} : vector<4x36xf32> to vector<4x1xf32>
    %132 = vector.extract_strided_slice %0 {offsets = [0, 1, 0, 1], sizes = [1, 1, 1, 2], strides = [1, 1, 1, 1]} : vector<1x4x4x4xf32> to vector<1x1x1x2xf32>
    %133 = vector.shape_cast %132 : vector<1x1x1x2xf32> to vector<1x2xf32>
    %134 = vector.broadcast %131 : vector<4x1xf32> to vector<4x2xf32>
    %135 = vector.broadcast %133 : vector<1x2xf32> to vector<4x2xf32>
    %136 = arith.mulf %134, %135 : vector<4x2xf32>
    %137 = arith.addf %124, %136 : vector<4x2xf32>
    %138 = vector.extract_strided_slice %0 {offsets = [0, 1, 1, 1], sizes = [1, 1, 1, 2], strides = [1, 1, 1, 1]} : vector<1x4x4x4xf32> to vector<1x1x1x2xf32>
    %139 = vector.shape_cast %138 : vector<1x1x1x2xf32> to vector<1x2xf32>
    %140 = vector.broadcast %131 : vector<4x1xf32> to vector<4x2xf32>
    %141 = vector.broadcast %139 : vector<1x2xf32> to vector<4x2xf32>
    %142 = arith.mulf %140, %141 : vector<4x2xf32>
    %143 = arith.addf %130, %142 : vector<4x2xf32>
    %144 = vector.extract_strided_slice %1 {offsets = [0, 11], sizes = [4, 1], strides = [1, 1]} : vector<4x36xf32> to vector<4x1xf32>
    %145 = vector.extract_strided_slice %0 {offsets = [0, 1, 0, 2], sizes = [1, 1, 1, 2], strides = [1, 1, 1, 1]} : vector<1x4x4x4xf32> to vector<1x1x1x2xf32>
    %146 = vector.shape_cast %145 : vector<1x1x1x2xf32> to vector<1x2xf32>
    %147 = vector.broadcast %144 : vector<4x1xf32> to vector<4x2xf32>
    %148 = vector.broadcast %146 : vector<1x2xf32> to vector<4x2xf32>
    %149 = arith.mulf %147, %148 : vector<4x2xf32>
    %150 = arith.addf %137, %149 : vector<4x2xf32>
    %151 = vector.extract_strided_slice %0 {offsets = [0, 1, 1, 2], sizes = [1, 1, 1, 2], strides = [1, 1, 1, 1]} : vector<1x4x4x4xf32> to vector<1x1x1x2xf32>
    %152 = vector.shape_cast %151 : vector<1x1x1x2xf32> to vector<1x2xf32>
    %153 = vector.broadcast %144 : vector<4x1xf32> to vector<4x2xf32>
    %154 = vector.broadcast %152 : vector<1x2xf32> to vector<4x2xf32>
    %155 = arith.mulf %153, %154 : vector<4x2xf32>
    %156 = arith.addf %143, %155 : vector<4x2xf32>
    %157 = vector.extract_strided_slice %1 {offsets = [0, 12], sizes = [4, 1], strides = [1, 1]} : vector<4x36xf32> to vector<4x1xf32>
    %158 = vector.extract_strided_slice %0 {offsets = [0, 1, 1, 0], sizes = [1, 1, 1, 2], strides = [1, 1, 1, 1]} : vector<1x4x4x4xf32> to vector<1x1x1x2xf32>
    %159 = vector.shape_cast %158 : vector<1x1x1x2xf32> to vector<1x2xf32>
    %160 = vector.broadcast %157 : vector<4x1xf32> to vector<4x2xf32>
    %161 = vector.broadcast %159 : vector<1x2xf32> to vector<4x2xf32>
    %162 = arith.mulf %160, %161 : vector<4x2xf32>
    %163 = arith.addf %150, %162 : vector<4x2xf32>
    %164 = vector.extract_strided_slice %0 {offsets = [0, 1, 2, 0], sizes = [1, 1, 1, 2], strides = [1, 1, 1, 1]} : vector<1x4x4x4xf32> to vector<1x1x1x2xf32>
    %165 = vector.shape_cast %164 : vector<1x1x1x2xf32> to vector<1x2xf32>
    %166 = vector.broadcast %157 : vector<4x1xf32> to vector<4x2xf32>
    %167 = vector.broadcast %165 : vector<1x2xf32> to vector<4x2xf32>
    %168 = arith.mulf %166, %167 : vector<4x2xf32>
    %169 = arith.addf %156, %168 : vector<4x2xf32>
    %170 = vector.extract_strided_slice %1 {offsets = [0, 13], sizes = [4, 1], strides = [1, 1]} : vector<4x36xf32> to vector<4x1xf32>
    %171 = vector.extract_strided_slice %0 {offsets = [0, 1, 1, 1], sizes = [1, 1, 1, 2], strides = [1, 1, 1, 1]} : vector<1x4x4x4xf32> to vector<1x1x1x2xf32>
    %172 = vector.shape_cast %171 : vector<1x1x1x2xf32> to vector<1x2xf32>
    %173 = vector.broadcast %170 : vector<4x1xf32> to vector<4x2xf32>
    %174 = vector.broadcast %172 : vector<1x2xf32> to vector<4x2xf32>
    %175 = arith.mulf %173, %174 : vector<4x2xf32>
    %176 = arith.addf %163, %175 : vector<4x2xf32>
    %177 = vector.extract_strided_slice %0 {offsets = [0, 1, 2, 1], sizes = [1, 1, 1, 2], strides = [1, 1, 1, 1]} : vector<1x4x4x4xf32> to vector<1x1x1x2xf32>
    %178 = vector.shape_cast %177 : vector<1x1x1x2xf32> to vector<1x2xf32>
    %179 = vector.broadcast %170 : vector<4x1xf32> to vector<4x2xf32>
    %180 = vector.broadcast %178 : vector<1x2xf32> to vector<4x2xf32>
    %181 = arith.mulf %179, %180 : vector<4x2xf32>
    %182 = arith.addf %169, %181 : vector<4x2xf32>
    %183 = vector.extract_strided_slice %1 {offsets = [0, 14], sizes = [4, 1], strides = [1, 1]} : vector<4x36xf32> to vector<4x1xf32>
    %184 = vector.extract_strided_slice %0 {offsets = [0, 1, 1, 2], sizes = [1, 1, 1, 2], strides = [1, 1, 1, 1]} : vector<1x4x4x4xf32> to vector<1x1x1x2xf32>
    %185 = vector.shape_cast %184 : vector<1x1x1x2xf32> to vector<1x2xf32>
    %186 = vector.broadcast %183 : vector<4x1xf32> to vector<4x2xf32>
    %187 = vector.broadcast %185 : vector<1x2xf32> to vector<4x2xf32>
    %188 = arith.mulf %186, %187 : vector<4x2xf32>
    %189 = arith.addf %176, %188 : vector<4x2xf32>
    %190 = vector.extract_strided_slice %0 {offsets = [0, 1, 2, 2], sizes = [1, 1, 1, 2], strides = [1, 1, 1, 1]} : vector<1x4x4x4xf32> to vector<1x1x1x2xf32>
    %191 = vector.shape_cast %190 : vector<1x1x1x2xf32> to vector<1x2xf32>
    %192 = vector.broadcast %183 : vector<4x1xf32> to vector<4x2xf32>
    %193 = vector.broadcast %191 : vector<1x2xf32> to vector<4x2xf32>
    %194 = arith.mulf %192, %193 : vector<4x2xf32>
    %195 = arith.addf %182, %194 : vector<4x2xf32>
    %196 = vector.extract_strided_slice %1 {offsets = [0, 15], sizes = [4, 1], strides = [1, 1]} : vector<4x36xf32> to vector<4x1xf32>
    %197 = vector.extract_strided_slice %0 {offsets = [0, 1, 2, 0], sizes = [1, 1, 1, 2], strides = [1, 1, 1, 1]} : vector<1x4x4x4xf32> to vector<1x1x1x2xf32>
    %198 = vector.shape_cast %197 : vector<1x1x1x2xf32> to vector<1x2xf32>
    %199 = vector.broadcast %196 : vector<4x1xf32> to vector<4x2xf32>
    %200 = vector.broadcast %198 : vector<1x2xf32> to vector<4x2xf32>
    %201 = arith.mulf %199, %200 : vector<4x2xf32>
    %202 = arith.addf %189, %201 : vector<4x2xf32>
    %203 = vector.extract_strided_slice %0 {offsets = [0, 1, 3, 0], sizes = [1, 1, 1, 2], strides = [1, 1, 1, 1]} : vector<1x4x4x4xf32> to vector<1x1x1x2xf32>
    %204 = vector.shape_cast %203 : vector<1x1x1x2xf32> to vector<1x2xf32>
    %205 = vector.broadcast %196 : vector<4x1xf32> to vector<4x2xf32>
    %206 = vector.broadcast %204 : vector<1x2xf32> to vector<4x2xf32>
    %207 = arith.mulf %205, %206 : vector<4x2xf32>
    %208 = arith.addf %195, %207 : vector<4x2xf32>
    %209 = vector.extract_strided_slice %1 {offsets = [0, 16], sizes = [4, 1], strides = [1, 1]} : vector<4x36xf32> to vector<4x1xf32>
    %210 = vector.extract_strided_slice %0 {offsets = [0, 1, 2, 1], sizes = [1, 1, 1, 2], strides = [1, 1, 1, 1]} : vector<1x4x4x4xf32> to vector<1x1x1x2xf32>
    %211 = vector.shape_cast %210 : vector<1x1x1x2xf32> to vector<1x2xf32>
    %212 = vector.broadcast %209 : vector<4x1xf32> to vector<4x2xf32>
    %213 = vector.broadcast %211 : vector<1x2xf32> to vector<4x2xf32>
    %214 = arith.mulf %212, %213 : vector<4x2xf32>
    %215 = arith.addf %202, %214 : vector<4x2xf32>
    %216 = vector.extract_strided_slice %0 {offsets = [0, 1, 3, 1], sizes = [1, 1, 1, 2], strides = [1, 1, 1, 1]} : vector<1x4x4x4xf32> to vector<1x1x1x2xf32>
    %217 = vector.shape_cast %216 : vector<1x1x1x2xf32> to vector<1x2xf32>
    %218 = vector.broadcast %209 : vector<4x1xf32> to vector<4x2xf32>
    %219 = vector.broadcast %217 : vector<1x2xf32> to vector<4x2xf32>
    %220 = arith.mulf %218, %219 : vector<4x2xf32>
    %221 = arith.addf %208, %220 : vector<4x2xf32>
    %222 = vector.extract_strided_slice %1 {offsets = [0, 17], sizes = [4, 1], strides = [1, 1]} : vector<4x36xf32> to vector<4x1xf32>
    %223 = vector.extract_strided_slice %0 {offsets = [0, 1, 2, 2], sizes = [1, 1, 1, 2], strides = [1, 1, 1, 1]} : vector<1x4x4x4xf32> to vector<1x1x1x2xf32>
    %224 = vector.shape_cast %223 : vector<1x1x1x2xf32> to vector<1x2xf32>
    %225 = vector.broadcast %222 : vector<4x1xf32> to vector<4x2xf32>
    %226 = vector.broadcast %224 : vector<1x2xf32> to vector<4x2xf32>
    %227 = arith.mulf %225, %226 : vector<4x2xf32>
    %228 = arith.addf %215, %227 : vector<4x2xf32>
    %229 = vector.extract_strided_slice %0 {offsets = [0, 1, 3, 2], sizes = [1, 1, 1, 2], strides = [1, 1, 1, 1]} : vector<1x4x4x4xf32> to vector<1x1x1x2xf32>
    %230 = vector.shape_cast %229 : vector<1x1x1x2xf32> to vector<1x2xf32>
    %231 = vector.broadcast %222 : vector<4x1xf32> to vector<4x2xf32>
    %232 = vector.broadcast %230 : vector<1x2xf32> to vector<4x2xf32>
    %233 = arith.mulf %231, %232 : vector<4x2xf32>
    %234 = arith.addf %221, %233 : vector<4x2xf32>
    %235 = vector.extract_strided_slice %1 {offsets = [0, 18], sizes = [4, 1], strides = [1, 1]} : vector<4x36xf32> to vector<4x1xf32>
    %236 = vector.extract_strided_slice %0 {offsets = [0, 2, 0, 0], sizes = [1, 1, 1, 2], strides = [1, 1, 1, 1]} : vector<1x4x4x4xf32> to vector<1x1x1x2xf32>
    %237 = vector.shape_cast %236 : vector<1x1x1x2xf32> to vector<1x2xf32>
    %238 = vector.broadcast %235 : vector<4x1xf32> to vector<4x2xf32>
    %239 = vector.broadcast %237 : vector<1x2xf32> to vector<4x2xf32>
    %240 = arith.mulf %238, %239 : vector<4x2xf32>
    %241 = arith.addf %228, %240 : vector<4x2xf32>
    %242 = vector.extract_strided_slice %0 {offsets = [0, 2, 1, 0], sizes = [1, 1, 1, 2], strides = [1, 1, 1, 1]} : vector<1x4x4x4xf32> to vector<1x1x1x2xf32>
    %243 = vector.shape_cast %242 : vector<1x1x1x2xf32> to vector<1x2xf32>
    %244 = vector.broadcast %235 : vector<4x1xf32> to vector<4x2xf32>
    %245 = vector.broadcast %243 : vector<1x2xf32> to vector<4x2xf32>
    %246 = arith.mulf %244, %245 : vector<4x2xf32>
    %247 = arith.addf %234, %246 : vector<4x2xf32>
    %248 = vector.extract_strided_slice %1 {offsets = [0, 19], sizes = [4, 1], strides = [1, 1]} : vector<4x36xf32> to vector<4x1xf32>
    %249 = vector.extract_strided_slice %0 {offsets = [0, 2, 0, 1], sizes = [1, 1, 1, 2], strides = [1, 1, 1, 1]} : vector<1x4x4x4xf32> to vector<1x1x1x2xf32>
    %250 = vector.shape_cast %249 : vector<1x1x1x2xf32> to vector<1x2xf32>
    %251 = vector.broadcast %248 : vector<4x1xf32> to vector<4x2xf32>
    %252 = vector.broadcast %250 : vector<1x2xf32> to vector<4x2xf32>
    %253 = arith.mulf %251, %252 : vector<4x2xf32>
    %254 = arith.addf %241, %253 : vector<4x2xf32>
    %255 = vector.extract_strided_slice %0 {offsets = [0, 2, 1, 1], sizes = [1, 1, 1, 2], strides = [1, 1, 1, 1]} : vector<1x4x4x4xf32> to vector<1x1x1x2xf32>
    %256 = vector.shape_cast %255 : vector<1x1x1x2xf32> to vector<1x2xf32>
    %257 = vector.broadcast %248 : vector<4x1xf32> to vector<4x2xf32>
    %258 = vector.broadcast %256 : vector<1x2xf32> to vector<4x2xf32>
    %259 = arith.mulf %257, %258 : vector<4x2xf32>
    %260 = arith.addf %247, %259 : vector<4x2xf32>
    %261 = vector.extract_strided_slice %1 {offsets = [0, 20], sizes = [4, 1], strides = [1, 1]} : vector<4x36xf32> to vector<4x1xf32>
    %262 = vector.extract_strided_slice %0 {offsets = [0, 2, 0, 2], sizes = [1, 1, 1, 2], strides = [1, 1, 1, 1]} : vector<1x4x4x4xf32> to vector<1x1x1x2xf32>
    %263 = vector.shape_cast %262 : vector<1x1x1x2xf32> to vector<1x2xf32>
    %264 = vector.broadcast %261 : vector<4x1xf32> to vector<4x2xf32>
    %265 = vector.broadcast %263 : vector<1x2xf32> to vector<4x2xf32>
    %266 = arith.mulf %264, %265 : vector<4x2xf32>
    %267 = arith.addf %254, %266 : vector<4x2xf32>
    %268 = vector.extract_strided_slice %0 {offsets = [0, 2, 1, 2], sizes = [1, 1, 1, 2], strides = [1, 1, 1, 1]} : vector<1x4x4x4xf32> to vector<1x1x1x2xf32>
    %269 = vector.shape_cast %268 : vector<1x1x1x2xf32> to vector<1x2xf32>
    %270 = vector.broadcast %261 : vector<4x1xf32> to vector<4x2xf32>
    %271 = vector.broadcast %269 : vector<1x2xf32> to vector<4x2xf32>
    %272 = arith.mulf %270, %271 : vector<4x2xf32>
    %273 = arith.addf %260, %272 : vector<4x2xf32>
    %274 = vector.extract_strided_slice %1 {offsets = [0, 21], sizes = [4, 1], strides = [1, 1]} : vector<4x36xf32> to vector<4x1xf32>
    %275 = vector.extract_strided_slice %0 {offsets = [0, 2, 1, 0], sizes = [1, 1, 1, 2], strides = [1, 1, 1, 1]} : vector<1x4x4x4xf32> to vector<1x1x1x2xf32>
    %276 = vector.shape_cast %275 : vector<1x1x1x2xf32> to vector<1x2xf32>
    %277 = vector.broadcast %274 : vector<4x1xf32> to vector<4x2xf32>
    %278 = vector.broadcast %276 : vector<1x2xf32> to vector<4x2xf32>
    %279 = arith.mulf %277, %278 : vector<4x2xf32>
    %280 = arith.addf %267, %279 : vector<4x2xf32>
    %281 = vector.extract_strided_slice %0 {offsets = [0, 2, 2, 0], sizes = [1, 1, 1, 2], strides = [1, 1, 1, 1]} : vector<1x4x4x4xf32> to vector<1x1x1x2xf32>
    %282 = vector.shape_cast %281 : vector<1x1x1x2xf32> to vector<1x2xf32>
    %283 = vector.broadcast %274 : vector<4x1xf32> to vector<4x2xf32>
    %284 = vector.broadcast %282 : vector<1x2xf32> to vector<4x2xf32>
    %285 = arith.mulf %283, %284 : vector<4x2xf32>
    %286 = arith.addf %273, %285 : vector<4x2xf32>
    %287 = vector.extract_strided_slice %1 {offsets = [0, 22], sizes = [4, 1], strides = [1, 1]} : vector<4x36xf32> to vector<4x1xf32>
    %288 = vector.extract_strided_slice %0 {offsets = [0, 2, 1, 1], sizes = [1, 1, 1, 2], strides = [1, 1, 1, 1]} : vector<1x4x4x4xf32> to vector<1x1x1x2xf32>
    %289 = vector.shape_cast %288 : vector<1x1x1x2xf32> to vector<1x2xf32>
    %290 = vector.broadcast %287 : vector<4x1xf32> to vector<4x2xf32>
    %291 = vector.broadcast %289 : vector<1x2xf32> to vector<4x2xf32>
    %292 = arith.mulf %290, %291 : vector<4x2xf32>
    %293 = arith.addf %280, %292 : vector<4x2xf32>
    %294 = vector.extract_strided_slice %0 {offsets = [0, 2, 2, 1], sizes = [1, 1, 1, 2], strides = [1, 1, 1, 1]} : vector<1x4x4x4xf32> to vector<1x1x1x2xf32>
    %295 = vector.shape_cast %294 : vector<1x1x1x2xf32> to vector<1x2xf32>
    %296 = vector.broadcast %287 : vector<4x1xf32> to vector<4x2xf32>
    %297 = vector.broadcast %295 : vector<1x2xf32> to vector<4x2xf32>
    %298 = arith.mulf %296, %297 : vector<4x2xf32>
    %299 = arith.addf %286, %298 : vector<4x2xf32>
    %300 = vector.extract_strided_slice %1 {offsets = [0, 23], sizes = [4, 1], strides = [1, 1]} : vector<4x36xf32> to vector<4x1xf32>
    %301 = vector.extract_strided_slice %0 {offsets = [0, 2, 1, 2], sizes = [1, 1, 1, 2], strides = [1, 1, 1, 1]} : vector<1x4x4x4xf32> to vector<1x1x1x2xf32>
    %302 = vector.shape_cast %301 : vector<1x1x1x2xf32> to vector<1x2xf32>
    %303 = vector.broadcast %300 : vector<4x1xf32> to vector<4x2xf32>
    %304 = vector.broadcast %302 : vector<1x2xf32> to vector<4x2xf32>
    %305 = arith.mulf %303, %304 : vector<4x2xf32>
    %306 = arith.addf %293, %305 : vector<4x2xf32>
    %307 = vector.extract_strided_slice %0 {offsets = [0, 2, 2, 2], sizes = [1, 1, 1, 2], strides = [1, 1, 1, 1]} : vector<1x4x4x4xf32> to vector<1x1x1x2xf32>
    %308 = vector.shape_cast %307 : vector<1x1x1x2xf32> to vector<1x2xf32>
    %309 = vector.broadcast %300 : vector<4x1xf32> to vector<4x2xf32>
    %310 = vector.broadcast %308 : vector<1x2xf32> to vector<4x2xf32>
    %311 = arith.mulf %309, %310 : vector<4x2xf32>
    %312 = arith.addf %299, %311 : vector<4x2xf32>
    %313 = vector.extract_strided_slice %1 {offsets = [0, 24], sizes = [4, 1], strides = [1, 1]} : vector<4x36xf32> to vector<4x1xf32>
    %314 = vector.extract_strided_slice %0 {offsets = [0, 2, 2, 0], sizes = [1, 1, 1, 2], strides = [1, 1, 1, 1]} : vector<1x4x4x4xf32> to vector<1x1x1x2xf32>
    %315 = vector.shape_cast %314 : vector<1x1x1x2xf32> to vector<1x2xf32>
    %316 = vector.broadcast %313 : vector<4x1xf32> to vector<4x2xf32>
    %317 = vector.broadcast %315 : vector<1x2xf32> to vector<4x2xf32>
    %318 = arith.mulf %316, %317 : vector<4x2xf32>
    %319 = arith.addf %306, %318 : vector<4x2xf32>
    %320 = vector.extract_strided_slice %0 {offsets = [0, 2, 3, 0], sizes = [1, 1, 1, 2], strides = [1, 1, 1, 1]} : vector<1x4x4x4xf32> to vector<1x1x1x2xf32>
    %321 = vector.shape_cast %320 : vector<1x1x1x2xf32> to vector<1x2xf32>
    %322 = vector.broadcast %313 : vector<4x1xf32> to vector<4x2xf32>
    %323 = vector.broadcast %321 : vector<1x2xf32> to vector<4x2xf32>
    %324 = arith.mulf %322, %323 : vector<4x2xf32>
    %325 = arith.addf %312, %324 : vector<4x2xf32>
    %326 = vector.extract_strided_slice %1 {offsets = [0, 25], sizes = [4, 1], strides = [1, 1]} : vector<4x36xf32> to vector<4x1xf32>
    %327 = vector.extract_strided_slice %0 {offsets = [0, 2, 2, 1], sizes = [1, 1, 1, 2], strides = [1, 1, 1, 1]} : vector<1x4x4x4xf32> to vector<1x1x1x2xf32>
    %328 = vector.shape_cast %327 : vector<1x1x1x2xf32> to vector<1x2xf32>
    %329 = vector.broadcast %326 : vector<4x1xf32> to vector<4x2xf32>
    %330 = vector.broadcast %328 : vector<1x2xf32> to vector<4x2xf32>
    %331 = arith.mulf %329, %330 : vector<4x2xf32>
    %332 = arith.addf %319, %331 : vector<4x2xf32>
    %333 = vector.extract_strided_slice %0 {offsets = [0, 2, 3, 1], sizes = [1, 1, 1, 2], strides = [1, 1, 1, 1]} : vector<1x4x4x4xf32> to vector<1x1x1x2xf32>
    %334 = vector.shape_cast %333 : vector<1x1x1x2xf32> to vector<1x2xf32>
    %335 = vector.broadcast %326 : vector<4x1xf32> to vector<4x2xf32>
    %336 = vector.broadcast %334 : vector<1x2xf32> to vector<4x2xf32>
    %337 = arith.mulf %335, %336 : vector<4x2xf32>
    %338 = arith.addf %325, %337 : vector<4x2xf32>
    %339 = vector.extract_strided_slice %1 {offsets = [0, 26], sizes = [4, 1], strides = [1, 1]} : vector<4x36xf32> to vector<4x1xf32>
    %340 = vector.extract_strided_slice %0 {offsets = [0, 2, 2, 2], sizes = [1, 1, 1, 2], strides = [1, 1, 1, 1]} : vector<1x4x4x4xf32> to vector<1x1x1x2xf32>
    %341 = vector.shape_cast %340 : vector<1x1x1x2xf32> to vector<1x2xf32>
    %342 = vector.broadcast %339 : vector<4x1xf32> to vector<4x2xf32>
    %343 = vector.broadcast %341 : vector<1x2xf32> to vector<4x2xf32>
    %344 = arith.mulf %342, %343 : vector<4x2xf32>
    %345 = arith.addf %332, %344 : vector<4x2xf32>
    %346 = vector.extract_strided_slice %0 {offsets = [0, 2, 3, 2], sizes = [1, 1, 1, 2], strides = [1, 1, 1, 1]} : vector<1x4x4x4xf32> to vector<1x1x1x2xf32>
    %347 = vector.shape_cast %346 : vector<1x1x1x2xf32> to vector<1x2xf32>
    %348 = vector.broadcast %339 : vector<4x1xf32> to vector<4x2xf32>
    %349 = vector.broadcast %347 : vector<1x2xf32> to vector<4x2xf32>
    %350 = arith.mulf %348, %349 : vector<4x2xf32>
    %351 = arith.addf %338, %350 : vector<4x2xf32>
    %352 = vector.extract_strided_slice %1 {offsets = [0, 27], sizes = [4, 1], strides = [1, 1]} : vector<4x36xf32> to vector<4x1xf32>
    %353 = vector.extract_strided_slice %0 {offsets = [0, 3, 0, 0], sizes = [1, 1, 1, 2], strides = [1, 1, 1, 1]} : vector<1x4x4x4xf32> to vector<1x1x1x2xf32>
    %354 = vector.shape_cast %353 : vector<1x1x1x2xf32> to vector<1x2xf32>
    %355 = vector.broadcast %352 : vector<4x1xf32> to vector<4x2xf32>
    %356 = vector.broadcast %354 : vector<1x2xf32> to vector<4x2xf32>
    %357 = arith.mulf %355, %356 : vector<4x2xf32>
    %358 = arith.addf %345, %357 : vector<4x2xf32>
    %359 = vector.extract_strided_slice %0 {offsets = [0, 3, 1, 0], sizes = [1, 1, 1, 2], strides = [1, 1, 1, 1]} : vector<1x4x4x4xf32> to vector<1x1x1x2xf32>
    %360 = vector.shape_cast %359 : vector<1x1x1x2xf32> to vector<1x2xf32>
    %361 = vector.broadcast %352 : vector<4x1xf32> to vector<4x2xf32>
    %362 = vector.broadcast %360 : vector<1x2xf32> to vector<4x2xf32>
    %363 = arith.mulf %361, %362 : vector<4x2xf32>
    %364 = arith.addf %351, %363 : vector<4x2xf32>
    %365 = vector.extract_strided_slice %1 {offsets = [0, 28], sizes = [4, 1], strides = [1, 1]} : vector<4x36xf32> to vector<4x1xf32>
    %366 = vector.extract_strided_slice %0 {offsets = [0, 3, 0, 1], sizes = [1, 1, 1, 2], strides = [1, 1, 1, 1]} : vector<1x4x4x4xf32> to vector<1x1x1x2xf32>
    %367 = vector.shape_cast %366 : vector<1x1x1x2xf32> to vector<1x2xf32>
    %368 = vector.broadcast %365 : vector<4x1xf32> to vector<4x2xf32>
    %369 = vector.broadcast %367 : vector<1x2xf32> to vector<4x2xf32>
    %370 = arith.mulf %368, %369 : vector<4x2xf32>
    %371 = arith.addf %358, %370 : vector<4x2xf32>
    %372 = vector.extract_strided_slice %0 {offsets = [0, 3, 1, 1], sizes = [1, 1, 1, 2], strides = [1, 1, 1, 1]} : vector<1x4x4x4xf32> to vector<1x1x1x2xf32>
    %373 = vector.shape_cast %372 : vector<1x1x1x2xf32> to vector<1x2xf32>
    %374 = vector.broadcast %365 : vector<4x1xf32> to vector<4x2xf32>
    %375 = vector.broadcast %373 : vector<1x2xf32> to vector<4x2xf32>
    %376 = arith.mulf %374, %375 : vector<4x2xf32>
    %377 = arith.addf %364, %376 : vector<4x2xf32>
    %378 = vector.extract_strided_slice %1 {offsets = [0, 29], sizes = [4, 1], strides = [1, 1]} : vector<4x36xf32> to vector<4x1xf32>
    %379 = vector.extract_strided_slice %0 {offsets = [0, 3, 0, 2], sizes = [1, 1, 1, 2], strides = [1, 1, 1, 1]} : vector<1x4x4x4xf32> to vector<1x1x1x2xf32>
    %380 = vector.shape_cast %379 : vector<1x1x1x2xf32> to vector<1x2xf32>
    %381 = vector.broadcast %378 : vector<4x1xf32> to vector<4x2xf32>
    %382 = vector.broadcast %380 : vector<1x2xf32> to vector<4x2xf32>
    %383 = arith.mulf %381, %382 : vector<4x2xf32>
    %384 = arith.addf %371, %383 : vector<4x2xf32>
    %385 = vector.extract_strided_slice %0 {offsets = [0, 3, 1, 2], sizes = [1, 1, 1, 2], strides = [1, 1, 1, 1]} : vector<1x4x4x4xf32> to vector<1x1x1x2xf32>
    %386 = vector.shape_cast %385 : vector<1x1x1x2xf32> to vector<1x2xf32>
    %387 = vector.broadcast %378 : vector<4x1xf32> to vector<4x2xf32>
    %388 = vector.broadcast %386 : vector<1x2xf32> to vector<4x2xf32>
    %389 = arith.mulf %387, %388 : vector<4x2xf32>
    %390 = arith.addf %377, %389 : vector<4x2xf32>
    %391 = vector.extract_strided_slice %1 {offsets = [0, 30], sizes = [4, 1], strides = [1, 1]} : vector<4x36xf32> to vector<4x1xf32>
    %392 = vector.extract_strided_slice %0 {offsets = [0, 3, 1, 0], sizes = [1, 1, 1, 2], strides = [1, 1, 1, 1]} : vector<1x4x4x4xf32> to vector<1x1x1x2xf32>
    %393 = vector.shape_cast %392 : vector<1x1x1x2xf32> to vector<1x2xf32>
    %394 = vector.broadcast %391 : vector<4x1xf32> to vector<4x2xf32>
    %395 = vector.broadcast %393 : vector<1x2xf32> to vector<4x2xf32>
    %396 = arith.mulf %394, %395 : vector<4x2xf32>
    %397 = arith.addf %384, %396 : vector<4x2xf32>
    %398 = vector.extract_strided_slice %0 {offsets = [0, 3, 2, 0], sizes = [1, 1, 1, 2], strides = [1, 1, 1, 1]} : vector<1x4x4x4xf32> to vector<1x1x1x2xf32>
    %399 = vector.shape_cast %398 : vector<1x1x1x2xf32> to vector<1x2xf32>
    %400 = vector.broadcast %391 : vector<4x1xf32> to vector<4x2xf32>
    %401 = vector.broadcast %399 : vector<1x2xf32> to vector<4x2xf32>
    %402 = arith.mulf %400, %401 : vector<4x2xf32>
    %403 = arith.addf %390, %402 : vector<4x2xf32>
    %404 = vector.extract_strided_slice %1 {offsets = [0, 31], sizes = [4, 1], strides = [1, 1]} : vector<4x36xf32> to vector<4x1xf32>
    %405 = vector.extract_strided_slice %0 {offsets = [0, 3, 1, 1], sizes = [1, 1, 1, 2], strides = [1, 1, 1, 1]} : vector<1x4x4x4xf32> to vector<1x1x1x2xf32>
    %406 = vector.shape_cast %405 : vector<1x1x1x2xf32> to vector<1x2xf32>
    %407 = vector.broadcast %404 : vector<4x1xf32> to vector<4x2xf32>
    %408 = vector.broadcast %406 : vector<1x2xf32> to vector<4x2xf32>
    %409 = arith.mulf %407, %408 : vector<4x2xf32>
    %410 = arith.addf %397, %409 : vector<4x2xf32>
    %411 = vector.extract_strided_slice %0 {offsets = [0, 3, 2, 1], sizes = [1, 1, 1, 2], strides = [1, 1, 1, 1]} : vector<1x4x4x4xf32> to vector<1x1x1x2xf32>
    %412 = vector.shape_cast %411 : vector<1x1x1x2xf32> to vector<1x2xf32>
    %413 = vector.broadcast %404 : vector<4x1xf32> to vector<4x2xf32>
    %414 = vector.broadcast %412 : vector<1x2xf32> to vector<4x2xf32>
    %415 = arith.mulf %413, %414 : vector<4x2xf32>
    %416 = arith.addf %403, %415 : vector<4x2xf32>
    %417 = vector.extract_strided_slice %1 {offsets = [0, 32], sizes = [4, 1], strides = [1, 1]} : vector<4x36xf32> to vector<4x1xf32>
    %418 = vector.extract_strided_slice %0 {offsets = [0, 3, 1, 2], sizes = [1, 1, 1, 2], strides = [1, 1, 1, 1]} : vector<1x4x4x4xf32> to vector<1x1x1x2xf32>
    %419 = vector.shape_cast %418 : vector<1x1x1x2xf32> to vector<1x2xf32>
    %420 = vector.broadcast %417 : vector<4x1xf32> to vector<4x2xf32>
    %421 = vector.broadcast %419 : vector<1x2xf32> to vector<4x2xf32>
    %422 = arith.mulf %420, %421 : vector<4x2xf32>
    %423 = arith.addf %410, %422 : vector<4x2xf32>
    %424 = vector.extract_strided_slice %0 {offsets = [0, 3, 2, 2], sizes = [1, 1, 1, 2], strides = [1, 1, 1, 1]} : vector<1x4x4x4xf32> to vector<1x1x1x2xf32>
    %425 = vector.shape_cast %424 : vector<1x1x1x2xf32> to vector<1x2xf32>
    %426 = vector.broadcast %417 : vector<4x1xf32> to vector<4x2xf32>
    %427 = vector.broadcast %425 : vector<1x2xf32> to vector<4x2xf32>
    %428 = arith.mulf %426, %427 : vector<4x2xf32>
    %429 = arith.addf %416, %428 : vector<4x2xf32>
    %430 = vector.extract_strided_slice %1 {offsets = [0, 33], sizes = [4, 1], strides = [1, 1]} : vector<4x36xf32> to vector<4x1xf32>
    %431 = vector.extract_strided_slice %0 {offsets = [0, 3, 2, 0], sizes = [1, 1, 1, 2], strides = [1, 1, 1, 1]} : vector<1x4x4x4xf32> to vector<1x1x1x2xf32>
    %432 = vector.shape_cast %431 : vector<1x1x1x2xf32> to vector<1x2xf32>
    %433 = vector.broadcast %430 : vector<4x1xf32> to vector<4x2xf32>
    %434 = vector.broadcast %432 : vector<1x2xf32> to vector<4x2xf32>
    %435 = arith.mulf %433, %434 : vector<4x2xf32>
    %436 = arith.addf %423, %435 : vector<4x2xf32>
    %437 = vector.extract_strided_slice %0 {offsets = [0, 3, 3, 0], sizes = [1, 1, 1, 2], strides = [1, 1, 1, 1]} : vector<1x4x4x4xf32> to vector<1x1x1x2xf32>
    %438 = vector.shape_cast %437 : vector<1x1x1x2xf32> to vector<1x2xf32>
    %439 = vector.broadcast %430 : vector<4x1xf32> to vector<4x2xf32>
    %440 = vector.broadcast %438 : vector<1x2xf32> to vector<4x2xf32>
    %441 = arith.mulf %439, %440 : vector<4x2xf32>
    %442 = arith.addf %429, %441 : vector<4x2xf32>
    %443 = vector.extract_strided_slice %1 {offsets = [0, 34], sizes = [4, 1], strides = [1, 1]} : vector<4x36xf32> to vector<4x1xf32>
    %444 = vector.extract_strided_slice %0 {offsets = [0, 3, 2, 1], sizes = [1, 1, 1, 2], strides = [1, 1, 1, 1]} : vector<1x4x4x4xf32> to vector<1x1x1x2xf32>
    %445 = vector.shape_cast %444 : vector<1x1x1x2xf32> to vector<1x2xf32>
    %446 = vector.broadcast %443 : vector<4x1xf32> to vector<4x2xf32>
    %447 = vector.broadcast %445 : vector<1x2xf32> to vector<4x2xf32>
    %448 = arith.mulf %446, %447 : vector<4x2xf32>
    %449 = arith.addf %436, %448 : vector<4x2xf32>
    %450 = vector.extract_strided_slice %0 {offsets = [0, 3, 3, 1], sizes = [1, 1, 1, 2], strides = [1, 1, 1, 1]} : vector<1x4x4x4xf32> to vector<1x1x1x2xf32>
    %451 = vector.shape_cast %450 : vector<1x1x1x2xf32> to vector<1x2xf32>
    %452 = vector.broadcast %443 : vector<4x1xf32> to vector<4x2xf32>
    %453 = vector.broadcast %451 : vector<1x2xf32> to vector<4x2xf32>
    %454 = arith.mulf %452, %453 : vector<4x2xf32>
    %455 = arith.addf %442, %454 : vector<4x2xf32>
    %456 = vector.extract_strided_slice %1 {offsets = [0, 35], sizes = [4, 1], strides = [1, 1]} : vector<4x36xf32> to vector<4x1xf32>
    %457 = vector.extract_strided_slice %0 {offsets = [0, 3, 2, 2], sizes = [1, 1, 1, 2], strides = [1, 1, 1, 1]} : vector<1x4x4x4xf32> to vector<1x1x1x2xf32>
    %458 = vector.shape_cast %457 : vector<1x1x1x2xf32> to vector<1x2xf32>
    %459 = vector.broadcast %456 : vector<4x1xf32> to vector<4x2xf32>
    %460 = vector.broadcast %458 : vector<1x2xf32> to vector<4x2xf32>
    %461 = arith.mulf %459, %460 : vector<4x2xf32>
    %462 = arith.addf %449, %461 : vector<4x2xf32>
    %463 = vector.extract_strided_slice %0 {offsets = [0, 3, 3, 2], sizes = [1, 1, 1, 2], strides = [1, 1, 1, 1]} : vector<1x4x4x4xf32> to vector<1x1x1x2xf32>
    %464 = vector.shape_cast %463 : vector<1x1x1x2xf32> to vector<1x2xf32>
    %465 = vector.broadcast %456 : vector<4x1xf32> to vector<4x2xf32>
    %466 = vector.broadcast %464 : vector<1x2xf32> to vector<4x2xf32>
    %467 = arith.mulf %465, %466 : vector<4x2xf32>
    %468 = arith.addf %455, %467 : vector<4x2xf32>
    %469 = vector.broadcast %2 : vector<4x1xf32> to vector<4x2xf32>
    %470 = arith.addf %462, %469 : vector<4x2xf32>
    %cst = arith.constant 0.000000e+00 : f32
    %cst_7 = arith.constant 6.000000e+00 : f32
    %471 = vector.broadcast %cst : f32 to vector<4x2xf32>
    %472 = arith.maximumf %471, %470 : vector<4x2xf32>
    %473 = vector.broadcast %cst_7 : f32 to vector<4x2xf32>
    %474 = arith.minimumf %473, %472 : vector<4x2xf32>
    %cst_8 = arith.constant 5.000000e+00 : f32
    %475 = vector.broadcast %cst_8 : f32 to vector<4x2xf32>
    %476 = arith.addf %474, %475 : vector<4x2xf32>
    %c0_9 = arith.constant 0 : index
    %c0_10 = arith.constant 0 : index
    %c0_11 = arith.constant 0 : index
    %477 = vector.load %arg3[%c0_9, %c0_10, %c0_11] : memref<1x4x4xf32, #tpu.memory_space<vmem>>, vector<1x4x2xf32>
    %478 = vector.shape_cast %477 : vector<1x4x2xf32> to vector<4x2xf32>
    %479 = vector.shape_cast %476 : vector<4x2xf32> to vector<1x4x2xf32>
    tpu.vector_store %arg3[%c0_9, %c0_10, %c0_11], %479 {strides = array<i32>} : memref<1x4x4xf32, #tpu.memory_space<vmem>>, vector<1x4x2xf32>,
    %480 = vector.broadcast %2 : vector<4x1xf32> to vector<4x2xf32>
    %481 = arith.addf %468, %480 : vector<4x2xf32>
    %cst_12 = arith.constant 0.000000e+00 : f32
    %cst_13 = arith.constant 6.000000e+00 : f32
    %482 = vector.broadcast %cst_12 : f32 to vector<4x2xf32>
    %483 = arith.maximumf %482, %481 : vector<4x2xf32>
    %484 = vector.broadcast %cst_13 : f32 to vector<4x2xf32>
    %485 = arith.minimumf %484, %483 : vector<4x2xf32>
    %cst_14 = arith.constant 5.000000e+00 : f32
    %486 = vector.broadcast %cst_14 : f32 to vector<4x2xf32>
    %487 = arith.addf %485, %486 : vector<4x2xf32>
    %c0_15 = arith.constant 0 : index
    %c0_16 = arith.constant 0 : index
    %c2 = arith.constant 2 : index
    %488 = vector.load %arg3[%c0_15, %c0_16, %c2] : memref<1x4x4xf32, #tpu.memory_space<vmem>>, vector<1x4x2xf32>
    %489 = vector.shape_cast %488 : vector<1x4x2xf32> to vector<4x2xf32>
    %490 = vector.shape_cast %487 : vector<4x2xf32> to vector<1x4x2xf32>
    tpu.vector_store %arg3[%c0_15, %c0_16, %c2], %490 {strides = array<i32>} : memref<1x4x4xf32, #tpu.memory_space<vmem>>, vector<1x4x2xf32>,
    return
  }
}

</mosaic_0001>

<llo_original>
// kernel: tpu_custom_call.1
$region0: #{tpu_custom_call.1}
  #allocation0 [shape = 'u32[]', space=smem, size = 0x4, offset = 0x4, fixed_abs, tag = 'smem constant byte address 0x4 - core index']
  #allocation1 [shape = 'u32[144,128]{1,0:T(1,128)}', space=vmem, size = 0x12000, scoped, tag = 'internal scratch']
  %s0 = inlined_call_operand.vmem [shape: f32[4,36], index: 0, kind: input, shape index: {}]
  %s1 = inlined_call_operand.vmem [shape: f32[4,1], index: 1, kind: input, shape index: {}]
  %s2 = inlined_call_operand.hbm [shape: f32[1,4,4,4], index: 2, kind: input, shape index: {}]
  %s3 = inlined_call_operand.hbm [shape: f32[1,4,4], index: 3, kind: output, shape index: {}]
  %s4 = sld [smem:[#allocation0]]
  $region26: #{tpu_custom_call.1} parent=0
    _
  %s6 = ssub.s32 1, %s4
  %s7 = scalar_select 0, %s6, %s4
  $region1: #{tpu_custom_call.1} parent=0
    #allocation2 [shape = 'u8[8192]{0}', space=vmem, size = 0x2000, scoped, tag = 'input window, operand 2, single buffered']
    #allocation3 [shape = 's32[1]{0}', space=sflag, size = 0x4, scoped, tag = 'scoped memory for tpu_custom_call.1']
    #allocation4 [shape = 's32[1]{0}', space=sflag, size = 0x4, scoped, tag = 'scoped memory for tpu_custom_call.1']
    #allocation5 [shape = 'u8[2048]{0}', space=vmem, size = 0x800, scoped, tag = 'output window, operand 0, single buffered']
    %8 = vsyncpa [#allocation3], 0
    %9 = vsyncpa [#allocation4], 0
    // Predicated region
    $region2: #{tpu_custom_call.1} parent=1 // pred_check
      _
    $region3: #{tpu_custom_call.1} parent=1 // pred_check_branch
      %11 = sbr.rel (0) target = $region5
    $region4: #{tpu_custom_call.1} parent=1 // pred_region
      _
    $region5: #{tpu_custom_call.1} parent=1 // pred_fallthru
      _
    // Predicated region
    $region6: #{tpu_custom_call.1} parent=1 // pred_check
      _
    $region7: #{tpu_custom_call.1} parent=1 // pred_check_branch
      %13 = sbr.rel (0) target = $region9
    $region8: #{tpu_custom_call.1} parent=1 // pred_region
      _
    $region9: #{tpu_custom_call.1} parent=1 // pred_fallthru
      _
    // Predicated region
    $region10: #{tpu_custom_call.1} parent=1 // pred_check
      _
    $region11: #{tpu_custom_call.1} parent=1 // pred_check_branch
      %15 = sbr.rel (0) target = $region13
    $region12: #{tpu_custom_call.1} parent=1 // pred_region
      %s17 = ssub.s32 256, 256
      %18 = vsyncadd [#allocation3], %s17
      %s19 = sshll.u32 [#allocation2], 4
      %s20 = int_to_ptr.vmem [resolvable:$true] %s19
      %25 = dma.hbm_to_vmem [thread:$0]  %s2, 256, %s20, [#allocation3], 64, 64, 4
    $region13: #{tpu_custom_call.1} parent=1 // pred_fallthru
      _
    // Predicated region
    $region14: #{tpu_custom_call.1} parent=1 // pred_check
      _
    $region15: #{tpu_custom_call.1} parent=1 // pred_check_branch
      %27 = sbr.rel (0) target = $region17
    $region16: #{tpu_custom_call.1} parent=1 // pred_region
      %28 = dma.done [#allocation3], 256
    $region17: #{tpu_custom_call.1} parent=1 // pred_fallthru
      _
    %v29 = vld [vmem:[#allocation2] sm:$0xf]
    %v30 = vld [vmem:[#allocation2 + $0x4] sm:$0xf]
    %v31 = vld [vmem:[#allocation2 + $0x8] sm:$0xf]
    %v32 = vld [vmem:[#allocation2 + $0xc] sm:$0xf]
    %v33 = vld [vmem:[%s0] sm:$0xf]
    %v34 = vld [vmem:[%s1] sm:$0xf]
    %36 = vset.pattern.permute.xlu0 0
    %37 = vperm.xlu0 %36, %v33
    %v38 = vpop.permute.xlu0 %37
    %v40 = vlaneseq
    %v41 = vshrl.u32 %v40, 7
    %v42 = vsub.s32 0, %v41
    %v43 = vrot.slane %v29, %v42
    %v44 = vmul.f32 %v38, %v43
    %v45 = vlaneseq
    %v46 = vshrl.u32 %v45, 7
    %v47 = vsub.s32 1, %v46
    %v48 = vrot.slane %v29, %v47
    %v49 = vmul.f32 %v38, %v48
    %50 = vset.pattern.permute.xlu0 1
    %51 = vperm.xlu0 %50, %v33
    %v52 = vpop.permute.xlu0 %51
    %v54 = vmul.f32 %v52, %v43
    %56 = vrot.lane.b32.xlu0 %v54, 127
    %v57 = vpop.permute.xlu0 %56
    %v59 = vadd.f32 %v44, %v57
    %v60 = vmul.f32 %v52, %v48
    %62 = vrot.lane.b32.xlu0 %v60, 127
    %v63 = vpop.permute.xlu0 %62
    %v65 = vadd.f32 %v49, %v63
    %66 = vset.pattern.permute.xlu0 2
    %67 = vperm.xlu0 %66, %v33
    %v68 = vpop.permute.xlu0 %67
    %v70 = vmul.f32 %v68, %v43
    %72 = vrot.lane.b32.xlu0 %v70, 126
    %v73 = vpop.permute.xlu0 %72
    %v75 = vadd.f32 %v59, %v73
    %v76 = vmul.f32 %v68, %v48
    %78 = vrot.lane.b32.xlu0 %v76, 126
    %v79 = vpop.permute.xlu0 %78
    %v81 = vadd.f32 %v65, %v79
    %82 = vset.pattern.permute.xlu0 3
    %83 = vperm.xlu0 %82, %v33
    %v84 = vpop.permute.xlu0 %83
    %v86 = vmul.f32 %v84, %v48
    %v87 = vadd.f32 %v75, %v86
    %v88 = vlaneseq
    %v89 = vshrl.u32 %v88, 7
    %v90 = vsub.s32 2, %v89
    %v91 = vrot.slane %v29, %v90
    %v92 = vmul.f32 %v84, %v91
    %v93 = vadd.f32 %v81, %v92
    %94 = vset.pattern.permute.xlu0 4
    %95 = vperm.xlu0 %94, %v33
    %v96 = vpop.permute.xlu0 %95
    %v98 = vmul.f32 %v96, %v48
    %100 = vrot.lane.b32.xlu0 %v98, 127
    %v101 = vpop.permute.xlu0 %100
    %v103 = vadd.f32 %v87, %v101
    %v104 = vmul.f32 %v96, %v91
    %106 = vrot.lane.b32.xlu0 %v104, 127
    %v107 = vpop.permute.xlu0 %106
    %v109 = vadd.f32 %v93, %v107
    %110 = vset.pattern.permute.xlu0 5
    %111 = vperm.xlu0 %110, %v33
    %v112 = vpop.permute.xlu0 %111
    %v114 = vmul.f32 %v112, %v48
    %116 = vrot.lane.b32.xlu0 %v114, 126
    %v117 = vpop.permute.xlu0 %116
    %v119 = vadd.f32 %v103, %v117
    %v120 = vmul.f32 %v112, %v91
    %122 = vrot.lane.b32.xlu0 %v120, 126
    %v123 = vpop.permute.xlu0 %122
    %v125 = vadd.f32 %v109, %v123
    %126 = vset.pattern.permute.xlu0 6
    %127 = vperm.xlu0 %126, %v33
    %v128 = vpop.permute.xlu0 %127
    %v130 = vmul.f32 %v128, %v91
    %v131 = vadd.f32 %v119, %v130
    %v132 = vlaneseq
    %v133 = vshrl.u32 %v132, 7
    %v134 = vsub.s32 3, %v133
    %v135 = vrot.slane %v29, %v134
    %v136 = vmul.f32 %v128, %v135
    %v137 = vadd.f32 %v125, %v136
    %138 = vset.pattern.permute.xlu0 7
    %139 = vperm.xlu0 %138, %v33
    %v140 = vpop.permute.xlu0 %139
    %v142 = vmul.f32 %v140, %v91
    %144 = vrot.lane.b32.xlu0 %v142, 127
    %v145 = vpop.permute.xlu0 %144
    %v147 = vadd.f32 %v131, %v145
    %v148 = vmul.f32 %v140, %v135
    %150 = vrot.lane.b32.xlu0 %v148, 127
    %v151 = vpop.permute.xlu0 %150
    %v153 = vadd.f32 %v137, %v151
    %154 = vset.pattern.permute.xlu0 8
    %155 = vperm.xlu0 %154, %v33
    %v156 = vpop.permute.xlu0 %155
    %v158 = vmul.f32 %v156, %v91
    %160 = vrot.lane.b32.xlu0 %v158, 126
    %v161 = vpop.permute.xlu0 %160
    %v163 = vadd.f32 %v147, %v161
    %v164 = vmul.f32 %v156, %v135
    %166 = vrot.lane.b32.xlu0 %v164, 126
    %v167 = vpop.permute.xlu0 %166
    %v169 = vadd.f32 %v153, %v167
    %170 = vset.pattern.permute.xlu0 9
    %171 = vperm.xlu0 %170, %v33
    %v172 = vpop.permute.xlu0 %171
    %v174 = vlaneseq
    %v175 = vshrl.u32 %v174, 7
    %v176 = vsub.s32 0, %v175
    %v177 = vrot.slane %v30, %v176
    %v178 = vmul.f32 %v172, %v177
    %v179 = vadd.f32 %v163, %v178
    %v180 = vlaneseq
    %v181 = vshrl.u32 %v180, 7
    %v182 = vsub.s32 1, %v181
    %v183 = vrot.slane %v30, %v182
    %v184 = vmul.f32 %v172, %v183
    %v185 = vadd.f32 %v169, %v184
    %186 = vset.pattern.permute.xlu0 10
    %187 = vperm.xlu0 %186, %v33
    %v188 = vpop.permute.xlu0 %187
    %v190 = vmul.f32 %v188, %v177
    %192 = vrot.lane.b32.xlu0 %v190, 127
    %v193 = vpop.permute.xlu0 %192
    %v195 = vadd.f32 %v179, %v193
    %v196 = vmul.f32 %v188, %v183
    %198 = vrot.lane.b32.xlu0 %v196, 127
    %v199 = vpop.permute.xlu0 %198
    %v201 = vadd.f32 %v185, %v199
    %202 = vset.pattern.permute.xlu0 11
    %203 = vperm.xlu0 %202, %v33
    %v204 = vpop.permute.xlu0 %203
    %v206 = vmul.f32 %v204, %v177
    %208 = vrot.lane.b32.xlu0 %v206, 126
    %v209 = vpop.permute.xlu0 %208
    %v211 = vadd.f32 %v195, %v209
    %v212 = vmul.f32 %v204, %v183
    %214 = vrot.lane.b32.xlu0 %v212, 126
    %v215 = vpop.permute.xlu0 %214
    %v217 = vadd.f32 %v201, %v215
    %218 = vset.pattern.permute.xlu0 12
    %219 = vperm.xlu0 %218, %v33
    %v220 = vpop.permute.xlu0 %219
    %v222 = vmul.f32 %v220, %v183
    %v223 = vadd.f32 %v211, %v222
    %v224 = vlaneseq
    %v225 = vshrl.u32 %v224, 7
    %v226 = vsub.s32 2, %v225
    %v227 = vrot.slane %v30, %v226
    %v228 = vmul.f32 %v220, %v227
    %v229 = vadd.f32 %v217, %v228
    %230 = vset.pattern.permute.xlu0 13
    %231 = vperm.xlu0 %230, %v33
    %v232 = vpop.permute.xlu0 %231
    %v234 = vmul.f32 %v232, %v183
    %236 = vrot.lane.b32.xlu0 %v234, 127
    %v237 = vpop.permute.xlu0 %236
    %v239 = vadd.f32 %v223, %v237
    %v240 = vmul.f32 %v232, %v227
    %242 = vrot.lane.b32.xlu0 %v240, 127
    %v243 = vpop.permute.xlu0 %242
    %v245 = vadd.f32 %v229, %v243
    %246 = vset.pattern.permute.xlu0 14
    %247 = vperm.xlu0 %246, %v33
    %v248 = vpop.permute.xlu0 %247
    %v250 = vmul.f32 %v248, %v183
    %252 = vrot.lane.b32.xlu0 %v250, 126
    %v253 = vpop.permute.xlu0 %252
    %v255 = vadd.f32 %v239, %v253
    %v256 = vmul.f32 %v248, %v227
    %258 = vrot.lane.b32.xlu0 %v256, 126
    %v259 = vpop.permute.xlu0 %258
    %v261 = vadd.f32 %v245, %v259
    %262 = vset.pattern.permute.xlu0 15
    %263 = vperm.xlu0 %262, %v33
    %v264 = vpop.permute.xlu0 %263
    %v266 = vmul.f32 %v264, %v227
    %v267 = vadd.f32 %v255, %v266
    %v268 = vlaneseq
    %v269 = vshrl.u32 %v268, 7
    %v270 = vsub.s32 3, %v269
    %v271 = vrot.slane %v30, %v270
    %v272 = vmul.f32 %v264, %v271
    %v273 = vadd.f32 %v261, %v272
    %274 = vset.pattern.permute.xlu0 16
    %275 = vperm.xlu0 %274, %v33
    %v276 = vpop.permute.xlu0 %275
    %v278 = vmul.f32 %v276, %v227
    %280 = vrot.lane.b32.xlu0 %v278, 127
    %v281 = vpop.permute.xlu0 %280
    %v283 = vadd.f32 %v267, %v281
    %v284 = vmul.f32 %v276, %v271
    %286 = vrot.lane.b32.xlu0 %v284, 127
    %v287 = vpop.permute.xlu0 %286
    %v289 = vadd.f32 %v273, %v287
    %290 = vset.pattern.permute.xlu0 17
    %291 = vperm.xlu0 %290, %v33
    %v292 = vpop.permute.xlu0 %291
    %v294 = vmul.f32 %v292, %v227
    %296 = vrot.lane.b32.xlu0 %v294, 126
    %v297 = vpop.permute.xlu0 %296
    %v299 = vadd.f32 %v283, %v297
    %v300 = vmul.f32 %v292, %v271
    %302 = vrot.lane.b32.xlu0 %v300, 126
    %v303 = vpop.permute.xlu0 %302
    %v305 = vadd.f32 %v289, %v303
    %306 = vset.pattern.permute.xlu0 18
    %307 = vperm.xlu0 %306, %v33
    %v308 = vpop.permute.xlu0 %307
    %v310 = vlaneseq
    %v311 = vshrl.u32 %v310, 7
    %v312 = vsub.s32 0, %v311
    %v313 = vrot.slane %v31, %v312
    %v314 = vmul.f32 %v308, %v313
    %v315 = vadd.f32 %v299, %v314
    %v316 = vlaneseq
    %v317 = vshrl.u32 %v316, 7
    %v318 = vsub.s32 1, %v317
    %v319 = vrot.slane %v31, %v318
    %v320 = vmul.f32 %v308, %v319
    %v321 = vadd.f32 %v305, %v320
    %322 = vset.pattern.permute.xlu0 19
    %323 = vperm.xlu0 %322, %v33
    %v324 = vpop.permute.xlu0 %323
    %v326 = vmul.f32 %v324, %v313
    %328 = vrot.lane.b32.xlu0 %v326, 127
    %v329 = vpop.permute.xlu0 %328
    %v331 = vadd.f32 %v315, %v329
    %v332 = vmul.f32 %v324, %v319
    %334 = vrot.lane.b32.xlu0 %v332, 127
    %v335 = vpop.permute.xlu0 %334
    %v337 = vadd.f32 %v321, %v335
    %338 = vset.pattern.permute.xlu0 20
    %339 = vperm.xlu0 %338, %v33
    %v340 = vpop.permute.xlu0 %339
    %v342 = vmul.f32 %v340, %v313
    %344 = vrot.lane.b32.xlu0 %v342, 126
    %v345 = vpop.permute.xlu0 %344
    %v347 = vadd.f32 %v331, %v345
    %v348 = vmul.f32 %v340, %v319
    %350 = vrot.lane.b32.xlu0 %v348, 126
    %v351 = vpop.permute.xlu0 %350
    %v353 = vadd.f32 %v337, %v351
    %354 = vset.pattern.permute.xlu0 21
    %355 = vperm.xlu0 %354, %v33
    %v356 = vpop.permute.xlu0 %355
    %v358 = vmul.f32 %v356, %v319
    %v359 = vadd.f32 %v347, %v358
    %v360 = vlaneseq
    %v361 = vshrl.u32 %v360, 7
    %v362 = vsub.s32 2, %v361
    %v363 = vrot.slane %v31, %v362
    %v364 = vmul.f32 %v356, %v363
    %v365 = vadd.f32 %v353, %v364
    %366 = vset.pattern.permute.xlu0 22
    %367 = vperm.xlu0 %366, %v33
    %v368 = vpop.permute.xlu0 %367
    %v370 = vmul.f32 %v368, %v319
    %372 = vrot.lane.b32.xlu0 %v370, 127
    %v373 = vpop.permute.xlu0 %372
    %v375 = vadd.f32 %v359, %v373
    %v376 = vmul.f32 %v368, %v363
    %378 = vrot.lane.b32.xlu0 %v376, 127
    %v379 = vpop.permute.xlu0 %378
    %v381 = vadd.f32 %v365, %v379
    %382 = vset.pattern.permute.xlu0 23
    %383 = vperm.xlu0 %382, %v33
    %v384 = vpop.permute.xlu0 %383
    %v386 = vmul.f32 %v384, %v319
    %388 = vrot.lane.b32.xlu0 %v386, 126
    %v389 = vpop.permute.xlu0 %388
    %v391 = vadd.f32 %v375, %v389
    %v392 = vmul.f32 %v384, %v363
    %394 = vrot.lane.b32.xlu0 %v392, 126
    %v395 = vpop.permute.xlu0 %394
    %v397 = vadd.f32 %v381, %v395
    %398 = vset.pattern.permute.xlu0 24
    %399 = vperm.xlu0 %398, %v33
    %v400 = vpop.permute.xlu0 %399
    %v402 = vmul.f32 %v400, %v363
    %v403 = vadd.f32 %v391, %v402
    %v404 = vlaneseq
    %v405 = vshrl.u32 %v404, 7
    %v406 = vsub.s32 3, %v405
    %v407 = vrot.slane %v31, %v406
    %v408 = vmul.f32 %v400, %v407
    %v409 = vadd.f32 %v397, %v408
    %410 = vset.pattern.permute.xlu0 25
    %411 = vperm.xlu0 %410, %v33
    %v412 = vpop.permute.xlu0 %411
    %v414 = vmul.f32 %v412, %v363
    %416 = vrot.lane.b32.xlu0 %v414, 127
    %v417 = vpop.permute.xlu0 %416
    %v419 = vadd.f32 %v403, %v417
    %v420 = vmul.f32 %v412, %v407
    %422 = vrot.lane.b32.xlu0 %v420, 127
    %v423 = vpop.permute.xlu0 %422
    %v425 = vadd.f32 %v409, %v423
    %426 = vset.pattern.permute.xlu0 26
    %427 = vperm.xlu0 %426, %v33
    %v428 = vpop.permute.xlu0 %427
    %v430 = vmul.f32 %v428, %v363
    %432 = vrot.lane.b32.xlu0 %v430, 126
    %v433 = vpop.permute.xlu0 %432
    %v435 = vadd.f32 %v419, %v433
    %v436 = vmul.f32 %v428, %v407
    %438 = vrot.lane.b32.xlu0 %v436, 126
    %v439 = vpop.permute.xlu0 %438
    %v441 = vadd.f32 %v425, %v439
    %442 = vset.pattern.permute.xlu0 27
    %443 = vperm.xlu0 %442, %v33
    %v444 = vpop.permute.xlu0 %443
    %v446 = vlaneseq
    %v447 = vshrl.u32 %v446, 7
    %v448 = vsub.s32 0, %v447
    %v449 = vrot.slane %v32, %v448
    %v450 = vmul.f32 %v444, %v449
    %v451 = vadd.f32 %v435, %v450
    %v452 = vlaneseq
    %v453 = vshrl.u32 %v452, 7
    %v454 = vsub.s32 1, %v453
    %v455 = vrot.slane %v32, %v454
    %v456 = vmul.f32 %v444, %v455
    %v457 = vadd.f32 %v441, %v456
    %458 = vset.pattern.permute.xlu0 28
    %459 = vperm.xlu0 %458, %v33
    %v460 = vpop.permute.xlu0 %459
    %v462 = vmul.f32 %v460, %v449
    %464 = vrot.lane.b32.xlu0 %v462, 127
    %v465 = vpop.permute.xlu0 %464
    %v467 = vadd.f32 %v451, %v465
    %v468 = vmul.f32 %v460, %v455
    %470 = vrot.lane.b32.xlu0 %v468, 127
    %v471 = vpop.permute.xlu0 %470
    %v473 = vadd.f32 %v457, %v471
    %474 = vset.pattern.permute.xlu0 29
    %475 = vperm.xlu0 %474, %v33
    %v476 = vpop.permute.xlu0 %475
    %v478 = vmul.f32 %v476, %v449
    %480 = vrot.lane.b32.xlu0 %v478, 126
    %v481 = vpop.permute.xlu0 %480
    %v483 = vadd.f32 %v467, %v481
    %v484 = vmul.f32 %v476, %v455
    %486 = vrot.lane.b32.xlu0 %v484, 126
    %v487 = vpop.permute.xlu0 %486
    %v489 = vadd.f32 %v473, %v487
    %490 = vset.pattern.permute.xlu0 30
    %491 = vperm.xlu0 %490, %v33
    %v492 = vpop.permute.xlu0 %491
    %v494 = vmul.f32 %v492, %v455
    %v495 = vadd.f32 %v483, %v494
    %v496 = vlaneseq
    %v497 = vshrl.u32 %v496, 7
    %v498 = vsub.s32 2, %v497
    %v499 = vrot.slane %v32, %v498
    %v500 = vmul.f32 %v492, %v499
    %v501 = vadd.f32 %v489, %v500
    %502 = vset.pattern.permute.xlu0 31
    %503 = vperm.xlu0 %502, %v33
    %v504 = vpop.permute.xlu0 %503
    %v506 = vmul.f32 %v504, %v455
    %508 = vrot.lane.b32.xlu0 %v506, 127
    %v509 = vpop.permute.xlu0 %508
    %v511 = vadd.f32 %v495, %v509
    %v512 = vmul.f32 %v504, %v499
    %514 = vrot.lane.b32.xlu0 %v512, 127
    %v515 = vpop.permute.xlu0 %514
    %v517 = vadd.f32 %v501, %v515
    %518 = vset.pattern.permute.xlu0 32
    %519 = vperm.xlu0 %518, %v33
    %v520 = vpop.permute.xlu0 %519
    %v522 = vmul.f32 %v520, %v455
    %524 = vrot.lane.b32.xlu0 %v522, 126
    %v525 = vpop.permute.xlu0 %524
    %v527 = vadd.f32 %v511, %v525
    %v528 = vmul.f32 %v520, %v499
    %530 = vrot.lane.b32.xlu0 %v528, 126
    %v531 = vpop.permute.xlu0 %530
    %v533 = vadd.f32 %v517, %v531
    %534 = vset.pattern.permute.xlu0 33
    %535 = vperm.xlu0 %534, %v33
    %v536 = vpop.permute.xlu0 %535
    %v538 = vmul.f32 %v536, %v499
    %v539 = vadd.f32 %v527, %v538
    %v540 = vlaneseq
    %v541 = vshrl.u32 %v540, 7
    %v542 = vsub.s32 3, %v541
    %v543 = vrot.slane %v32, %v542
    %v544 = vmul.f32 %v536, %v543
    %v545 = vadd.f32 %v533, %v544
    %546 = vset.pattern.permute.xlu0 34
    %547 = vperm.xlu0 %546, %v33
    %v548 = vpop.permute.xlu0 %547
    %v550 = vmul.f32 %v548, %v499
    %552 = vrot.lane.b32.xlu0 %v550, 127
    %v553 = vpop.permute.xlu0 %552
    %v555 = vadd.f32 %v539, %v553
    %v556 = vmul.f32 %v548, %v543
    %558 = vrot.lane.b32.xlu0 %v556, 127
    %v559 = vpop.permute.xlu0 %558
    %v561 = vadd.f32 %v545, %v559
    %562 = vset.pattern.permute.xlu0 35
    %563 = vperm.xlu0 %562, %v33
    %v564 = vpop.permute.xlu0 %563
    %v566 = vmul.f32 %v564, %v499
    %568 = vrot.lane.b32.xlu0 %v566, 126
    %v569 = vpop.permute.xlu0 %568
    %v571 = vadd.f32 %v555, %v569
    %v572 = vmul.f32 %v564, %v543
    %574 = vrot.lane.b32.xlu0 %v572, 126
    %v575 = vpop.permute.xlu0 %574
    %v577 = vadd.f32 %v561, %v575
    %579 = vset.pattern.permute.xlu0 0
    %580 = vperm.xlu0 %579, %v34
    %v581 = vpop.permute.xlu0 %580
    %v583 = vadd.f32 %v571, %v581
    %v584 = vmax.f32 %v583, 0.0
    %v585 = vmin.f32 %v584, 6.0
    %v586 = vadd.f32 %v585, 5.0
    %vm587 = vcmask 11264
    %588 = vst.msk [vmem:[#allocation5] sm:$0xf] %vm587, %v586
    %v589 = vadd.f32 %v577, %v581
    %v590 = vmax.f32 %v589, 0.0
    %v591 = vmin.f32 %v590, 6.0
    %v592 = vadd.f32 %v591, 5.0
    %594 = vrot.lane.b32.xlu0 %v592, 2
    %v595 = vpop.permute.xlu0 %594
    %vm597 = vcmask 27664
    %598 = vst.msk [vmem:[#allocation5] sm:$0xf] %vm597, %v595
    // Predicated region
    $region18: #{tpu_custom_call.1} parent=1 // pred_check
      _
    $region19: #{tpu_custom_call.1} parent=1 // pred_check_branch
      %600 = sbr.rel (0) target = $region21
    $region20: #{tpu_custom_call.1} parent=1 // pred_region
      %s602 = ssub.s32 64, 64
      %603 = vsyncadd [#allocation4], %s602
      %s605 = sshll.u32 [#allocation5], 4
      %s606 = int_to_ptr.vmem [resolvable:$true] %s605
      %608 = dma.vmem_to_hbm [thread:$0]  %s606, 64, %s3, [#allocation4]
    $region21: #{tpu_custom_call.1} parent=1 // pred_fallthru
      _
    // Predicated region
    $region22: #{tpu_custom_call.1} parent=1 // pred_check
      _
    $region23: #{tpu_custom_call.1} parent=1 // pred_check_branch
      %610 = sbr.rel (0) target = $region25
    $region24: #{tpu_custom_call.1} parent=1 // pred_region
      %611 = dma.done [#allocation4], 64
    $region25: #{tpu_custom_call.1} parent=1 // pred_fallthru
      _
    %612 = vsyncpa [#allocation3], 1
    %613 = vsyncpa [#allocation4], 1

</llo_original>
